<compile_context>
chip_gen: v7x
topology: tpu7x:2x2x1
jax: 0.10.0
libtpu: 0.0.40
codegen_flags: <defaults>
</compile_context>

<pallas_src>
import jax
import jax.numpy as jnp
from jax import lax
from jax.experimental import pallas as pl
from jax.experimental.pallas import tpu as pltpu


def _tln_kernel(m_ref, s_ref, x_ref, o_ref):
    # m_ref, s_ref: (1,) f32 scalars in SMEM
    # x_ref, o_ref: (D, TL) tile in VMEM (one batch element, one L-tile)
    x = x_ref[...].astype(jnp.float32)                      # (D, TL)
    inv_d = jnp.float32(1.0 / x.shape[0])

    # Two-pass statistics over the channel (sublane) axis.
    mean = jnp.sum(x, axis=0, keepdims=True) * inv_d        # (1, TL)
    xc = x - mean                                           # (D, TL)
    var = jnp.sum(xc * xc, axis=0, keepdims=True) * inv_d   # (1, TL)

    # s / std == s * rsqrt(var); rsqrt(0) -> inf matches torch's division by 0.
    scale = s_ref[0] * lax.rsqrt(var)                       # (1, TL)

    # y = s/std * (x - mean + m)
    o_ref[...] = ((xc + m_ref[0]) * scale).astype(o_ref.dtype)


def _round_up_128(v):
    return ((v + 127) // 128) * 128


def _pick_lane_tile(B, D, L, itemsize, vmem_budget_bytes):
    """Lane-tile TL: multiple of 128 (or full L when L <= 128), sized so the
    double-buffered in+out footprint 4*D*TL*itemsize stays within budget, and
    split so v7x's two TensorCores both get at least one grid step."""
    if L <= 128:
        # Full extent: exact block, no masking needed (works for any small L).
        return L

    # VMEM-budget cap (keeps v5e 16 MiB / v7x 32 MiB scoped defaults happy).
    tl = (vmem_budget_bytes // (4 * D * itemsize)) // 128 * 128
    # Don't exceed the largest 128-multiple <= L (ragged edge handled by cdiv).
    tl = max(128, min(tl, (L // 128) * 128))

    # Guarantee >= 2 total grid steps so v7x's two TensorCores are both busy.
    if B * pl.cdiv(L, tl) < 2 and tl > 128:
        tl = max(128, _round_up_128(tl // 2))
    return tl


def transposed_ln(x, m_param, s_param, *, vmem_budget_bytes=24 << 20):
    """x: (B, D, L); m_param, s_param: shape (1,) float32 parameters."""
    B, D, L = x.shape
    itemsize = jnp.dtype(x.dtype).itemsize
    tl = _pick_lane_tile(B, D, L, itemsize, vmem_budget_bytes)
    grid = (B, pl.cdiv(L, tl))

    # Purely HBM-bound: one read + one write of x, tiny per-element compute.
    cost = pl.CostEstimate(
        flops=7 * B * D * L,
        transcendentals=B * L,                # rsqrt per (batch, position)
        bytes_accessed=2 * B * D * L * itemsize,
    )

    return pl.pallas_call(
        _tln_kernel,
        out_shape=jax.ShapeDtypeStruct((B, D, L), x.dtype),
        grid=grid,
        in_specs=[
            pl.BlockSpec(memory_space=pltpu.SMEM),                      # m (scalar)
            pl.BlockSpec(memory_space=pltpu.SMEM),                      # s (scalar)
            pl.BlockSpec((None, D, tl), lambda b, l: (b, 0, l)),        # x tile
        ],
        out_specs=pl.BlockSpec((None, D, tl), lambda b, l: (b, 0, l)),
        compiler_params=pltpu.CompilerParams(
            dimension_semantics=("parallel", "parallel"),
            vmem_limit_bytes=32 * 1024 * 1024,
        ),
        cost_estimate=cost,
    )(m_param, s_param, x)


def transposed_ln_ref(x, m_param, s_param):
    """Pure-JAX reference matching torch.std_mean(unbiased=False)."""
    xf = x.astype(jnp.float32)
    mean = jnp.mean(xf, axis=-2, keepdims=True)
    var = jnp.mean((xf - mean) ** 2, axis=-2, keepdims=True)
    std = jnp.sqrt(var)
    y = s_param[0] / std * (xf - mean + m_param[0])
    return y.astype(x.dtype)


if __name__ == "__main__":
    key = jax.random.PRNGKey(0)

    # Deterministic parameter init, matching nn.Parameter(zeros(1)) / ones(1).
    m_param = jnp.zeros((1,), dtype=jnp.float32)
    s_param = jnp.ones((1,), dtype=jnp.float32)

    # Case 1: small module-consistent shape (B=2, D=4 channels, L=16).
    k1, k2 = jax.random.split(key)
    x1 = jax.random.normal(k1, (2, 4, 16), dtype=jnp.float32)
    y1 = jax.block_until_ready(transposed_ln(x1, m_param, s_param))
    y1_ref = transposed_ln_ref(x1, m_param, s_param)
    assert jnp.allclose(y1, y1_ref, atol=1e-5, rtol=1e-5), "mismatch (case 1)"

    # Case 2: exercises lane tiling + the >=2-grid-step split (B=1, L=384).
    x2 = jax.random.normal(k2, (1, 8, 384), dtype=jnp.float32)
    y2 = jax.block_until_ready(transposed_ln(x2, m_param, s_param))
    y2_ref = transposed_ln_ref(x2, m_param, s_param)
    assert jnp.allclose(y2, y2_ref, atol=1e-5, rtol=1e-5), "mismatch (case 2)"

    print("KERNEL_OK")
</pallas_src>

<mosaic_0001>
module attributes {stable_mosaic.version = 11 : i64} {
  func.func @_tln_kernel(%arg0: i32, %arg1: i32, %arg2: memref<1xf32, #tpu.memory_space<smem>>, %arg3: memref<1xf32, #tpu.memory_space<smem>>, %arg4: memref<1x4x16xf32, #tpu.memory_space<vmem>>, %arg5: memref<1x4x16xf32, #tpu.memory_space<vmem>>) attributes {dimension_semantics = [#tpu.dimension_semantics<parallel>, #tpu.dimension_semantics<parallel>], iteration_bounds = array<i64: 2, 1>, scalar_prefetch = 0 : i64, scratch_operands = 0 : i64, tpu.core_type = #tpu.core_type<tc>, window_params = [{transform_indices = @transform_0, window_bounds = array<i64: 1>}, {transform_indices = @transform_1, window_bounds = array<i64: 1>}, {transform_indices = @transform_2, window_bounds = array<i64: 1, 4, 16>}, {transform_indices = @transform_3, window_bounds = array<i64: 1, 4, 16>}]} {
    %c0 = arith.constant 0 : index
    %c0_0 = arith.constant 0 : index
    %c0_1 = arith.constant 0 : index
    %0 = vector.load %arg4[%c0, %c0_0, %c0_1] : memref<1x4x16xf32, #tpu.memory_space<vmem>>, vector<1x4x16xf32>
    %1 = vector.shape_cast %0 : vector<1x4x16xf32> to vector<4x16xf32>
    %cst = arith.constant dense<0.000000e+00> : vector<16xf32>
    %2 = vector.multi_reduction <add>, %1, %cst [0] : vector<4x16xf32> to vector<16xf32>
    %3 = vector.shape_cast %2 : vector<16xf32> to vector<1x16xf32>
    %cst_2 = arith.constant 2.500000e-01 : f32
    %4 = vector.broadcast %cst_2 : f32 to vector<1x16xf32>
    %5 = arith.mulf %3, %4 : vector<1x16xf32>
    %6 = vector.broadcast %5 : vector<1x16xf32> to vector<4x16xf32>
    %7 = arith.subf %1, %6 : vector<4x16xf32>
    %8 = arith.mulf %7, %7 : vector<4x16xf32>
    %cst_3 = arith.constant dense<0.000000e+00> : vector<16xf32>
    %9 = vector.multi_reduction <add>, %8, %cst_3 [0] : vector<4x16xf32> to vector<16xf32>
    %10 = vector.shape_cast %9 : vector<16xf32> to vector<1x16xf32>
    %cst_4 = arith.constant 2.500000e-01 : f32
    %11 = vector.broadcast %cst_4 : f32 to vector<1x16xf32>
    %12 = arith.mulf %10, %11 : vector<1x16xf32>
    %c0_5 = arith.constant 0 : index
    %13 = memref.load %arg3[%c0_5] : memref<1xf32, #tpu.memory_space<smem>>
    %14 = math.rsqrt %12 : vector<1x16xf32>
    %15 = vector.broadcast %13 : f32 to vector<1x16xf32>
    %16 = arith.mulf %15, %14 : vector<1x16xf32>
    %c0_6 = arith.constant 0 : index
    %17 = memref.load %arg2[%c0_6] : memref<1xf32, #tpu.memory_space<smem>>
    %18 = vector.broadcast %17 : f32 to vector<4x16xf32>
    %19 = arith.addf %7, %18 : vector<4x16xf32>
    %20 = vector.broadcast %16 : vector<1x16xf32> to vector<4x16xf32>
    %21 = arith.mulf %19, %20 : vector<4x16xf32>
    %c0_7 = arith.constant 0 : index
    %c0_8 = arith.constant 0 : index
    %c0_9 = arith.constant 0 : index
    %22 = vector.load %arg5[%c0_7, %c0_8, %c0_9] : memref<1x4x16xf32, #tpu.memory_space<vmem>>, vector<1x4x16xf32>
    %23 = vector.shape_cast %22 : vector<1x4x16xf32> to vector<4x16xf32>
    %24 = vector.shape_cast %21 : vector<4x16xf32> to vector<1x4x16xf32>
    tpu.vector_store %arg5[%c0_7, %c0_8, %c0_9], %24 {strides = array<i32>} : memref<1x4x16xf32, #tpu.memory_space<vmem>>, vector<1x4x16xf32>,
    return
  }
  func.func @transform_0(%arg0: i32, %arg1: i32) -> i32 {
    %c0_i32 = arith.constant 0 : i32
    %c0_i32_0 = arith.constant 0 : i32
    return %c0_i32 : i32
  }
  func.func @transform_1(%arg0: i32, %arg1: i32) -> i32 {
    %c0_i32 = arith.constant 0 : i32
    %c0_i32_0 = arith.constant 0 : i32
    return %c0_i32 : i32
  }
  func.func @transform_2(%arg0: i32, %arg1: i32) -> (i32, i32, i32) {
    %c0_i32 = arith.constant 0 : i32
    %c0_i32_0 = arith.constant 0 : i32
    return %arg0, %c0_i32, %arg1 : i32, i32, i32
  }
  func.func @transform_3(%arg0: i32, %arg1: i32) -> (i32, i32, i32) {
    %c0_i32 = arith.constant 0 : i32
    %c0_i32_0 = arith.constant 0 : i32
    return %arg0, %c0_i32, %arg1 : i32, i32, i32
  }
}

</mosaic_0001>

<llo_original>
// kernel: tpu_custom_call.1
$region0: #{tpu_custom_call.1}
  #allocation0 [shape = 'u32[]', space=smem, size = 0x4, offset = 0x4, fixed_abs, tag = 'smem constant byte address 0x4 - core index']
  #allocation1 [shape = 'u32[144,128]{1,0:T(1,128)}', space=vmem, size = 0x12000, scoped, tag = 'internal scratch']
  #allocation2 [shape = 'f32[1]{0:T(128)S(6)}', space=smem, size = 0x200, scoped, tag = 'scoped memory for tpu_custom_call.1']
  #allocation3 [shape = 'f32[1]{0:T(128)S(6)}', space=smem, size = 0x200, scoped, tag = 'scoped memory for tpu_custom_call.1']
  %s0 = inlined_call_operand.<no memory space> [shape: f32[1], index: 0, kind: input, shape index: {}]
  %s1 = inlined_call_operand.<no memory space> [shape: f32[1], index: 1, kind: input, shape index: {}]
  %s2 = inlined_call_operand.hbm [shape: f32[2,4,16], index: 2, kind: input, shape index: {}]
  %s3 = inlined_call_operand.hbm [shape: f32[2,4,16], index: 3, kind: output, shape index: {}]
  %s4 = sld [smem:[#allocation0]]
  $region49: #{tpu_custom_call.1} parent=0
    _
  %s6 = ssub.s32 1, %s4
  %s7 = scalar_select 0, %s6, %s4
  %8 = sst [smem:[#allocation2]] %s0
  %9 = sst [smem:[#allocation3]] %s1
  $region1: #{tpu_custom_call.1} parent=0
    #allocation4 [shape = 'u8[4096]{0}', space=vmem, size = 0x1000, scoped, tag = 'input window, operand 2']
    #allocation5 [shape = 's32[2]{0}', space=sflag, size = 0x8, scoped, tag = 'scoped memory for tpu_custom_call.1']
    #allocation6 [shape = 's32[2]{0}', space=sflag, size = 0x8, scoped, tag = 'scoped memory for tpu_custom_call.1']
    #allocation7 [shape = 'u8[4096]{0}', space=vmem, size = 0x1000, scoped, tag = 'output window, operand 0']
    %10 = vsyncpa [#allocation5], 0
    %s11 = scalar_lea.sflag [#allocation5], 1
    %12 = vsyncpa %s11, 0
    %13 = vsyncpa [#allocation6], 0
    %s14 = scalar_lea.sflag [#allocation6], 1
    %15 = vsyncpa %s14, 0
    loop: start=0, step=1, limit=4
    $region2: #{tpu_custom_call.1} parent=1 // loop_pre_header
      _
    $region3: #{tpu_custom_call.1} parent=1 // loop_header
      %s17 = sphi 0, %s21
      %p18 = scmp.ge.s32.totalorder %s17, 4
      %s24 = sphi 0, %s36
      %s25 = sphi 0, %s32
      %s26 = sphi 0, %s24
      %s27 = sphi 0, %s25
      %s28 = sphi 0, %s26
      %s29 = sphi 0, %s27
      %s37 = sphi 0, %s37
      %s39 = sphi 0, %s37
      %s40 = sphi 0, %s39
      %s54 = sphi 0, %s40
      %s58 = sphi 0, %s58
      %s60 = sphi 0, %s58
      %s61 = sphi 0, %s60
      %s75 = sphi 0, %s61
      %s83 = sphi 0, %s85
      %s86 = sphi 0, %s83
      %s87 = sphi 0, %s86
      %s103 = sphi 0, %s87
      %s111 = sphi 0, %s113
      %s114 = sphi 0, %s111
      %s115 = sphi 0, %s114
      %s131 = sphi 0, %s115
    $region4: #{tpu_custom_call.1} parent=1 // loop_header_branch
      %20 = sbr.rel (%p18) target = $region8
    $region5: #{tpu_custom_call.1} parent=1 // loop_body
      %s22 = ssub.s32 %s17, 1
      %s23 = ssub.s32 %s17, 2
      %s30 = sadd.s32 1, %s25
      %p31 = scmp.ge.s32.totalorder %s30, 1
      %s32 = scalar_select %p31, 0, %s30
      %s33 = sadd.s32 1, %s24
      %s34 = scalar_select %p31, %s33, %s24
      %p35 = scmp.ge.s32.totalorder %s34, 2
      %s36 = scalar_select %p35, 0, %s34
      %s38 = sadd.s32 %s37, 1
      %p41 = scmp.eq.s32.totalorder %s17, 1
      %p42 = scmp.ne.s32.totalorder %s37, %s39
      %p43 = scmp.eq.s32.totalorder %s17, 0
      %p44 = por %p42, %p43
      %p45 = scmp.ne.s32.totalorder %s37, %s39
      %p46 = scmp.eq.s32.totalorder %s22, 1
      %p47 = por %p45, %p46
      %p48 = scmp.ne.s32.totalorder %s39, %s40
      %p49 = scmp.eq.s32.totalorder %s22, 0
      %p50 = por %p48, %p49
      %p51 = scmp.ne.s32.totalorder %s39, %s40
      %p52 = scmp.eq.s32.totalorder %s23, 1
      %p53 = por %p51, %p52
      %p55 = scmp.ne.s32.totalorder %s40, %s54
      %p56 = scmp.eq.s32.totalorder %s23, 0
      %p57 = por %p55, %p56
      %s59 = sadd.s32 %s58, 1
      %p62 = scmp.eq.s32.totalorder %s17, 1
      %p63 = scmp.ne.s32.totalorder %s58, %s60
      %p64 = scmp.eq.s32.totalorder %s17, 0
      %p65 = por %p63, %p64
      %p66 = scmp.ne.s32.totalorder %s58, %s60
      %p67 = scmp.eq.s32.totalorder %s22, 1
      %p68 = por %p66, %p67
      %p69 = scmp.ne.s32.totalorder %s60, %s61
      %p70 = scmp.eq.s32.totalorder %s22, 0
      %p71 = por %p69, %p70
      %p72 = scmp.ne.s32.totalorder %s60, %s61
      %p73 = scmp.eq.s32.totalorder %s23, 1
      %p74 = por %p72, %p73
      %p76 = scmp.ne.s32.totalorder %s61, %s75
      %p77 = scmp.eq.s32.totalorder %s23, 0
      %p78 = por %p76, %p77
      %s79 = ssub.s32 %s24, %s36
      %s80 = ssub.s32 %s25, %s32
      %s81 = sor.u32 %s79, %s80
      %p82 = scmp.eq.s32.totalorder %s81, 0
      %s84 = sadd.s32 %s83, 1
      %s85 = scalar_select %p82, %s83, %s84
      %p88 = pneg %p82
      %p89 = scmp.eq.s32.totalorder %s17, 1
      %p90 = por %p88, %p89
      %p91 = scmp.ne.s32.totalorder %s83, %s86
      %p92 = scmp.eq.s32.totalorder %s17, 0
      %p93 = por %p91, %p92
      %p94 = scmp.ne.s32.totalorder %s83, %s86
      %p95 = scmp.eq.s32.totalorder %s22, 1
      %p96 = por %p94, %p95
      %p97 = scmp.ne.s32.totalorder %s86, %s87
      %p98 = scmp.eq.s32.totalorder %s22, 0
      %p99 = por %p97, %p98
      %p100 = scmp.ne.s32.totalorder %s86, %s87
      %p101 = scmp.eq.s32.totalorder %s23, 1
      %p102 = por %p100, %p101
      %p104 = scmp.ne.s32.totalorder %s87, %s103
      %p105 = scmp.eq.s32.totalorder %s23, 0
      %p106 = por %p104, %p105
      %s107 = ssub.s32 %s24, %s36
      %s108 = ssub.s32 %s25, %s32
      %s109 = sor.u32 %s107, %s108
      %p110 = scmp.eq.s32.totalorder %s109, 0
      %s112 = sadd.s32 %s111, 1
      %s113 = scalar_select %p110, %s111, %s112
      %p116 = pneg %p110
      %p117 = scmp.eq.s32.totalorder %s17, 1
      %p118 = por %p116, %p117
      %p119 = scmp.ne.s32.totalorder %s111, %s114
      %p120 = scmp.eq.s32.totalorder %s17, 0
      %p121 = por %p119, %p120
      %p122 = scmp.ne.s32.totalorder %s111, %s114
      %p123 = scmp.eq.s32.totalorder %s22, 1
      %p124 = por %p122, %p123
      %p125 = scmp.ne.s32.totalorder %s114, %s115
      %p126 = scmp.eq.s32.totalorder %s22, 0
      %p127 = por %p125, %p126
      %p128 = scmp.ne.s32.totalorder %s114, %s115
      %p129 = scmp.eq.s32.totalorder %s23, 1
      %p130 = por %p128, %p129
      %p132 = scmp.ne.s32.totalorder %s115, %s131
      %p133 = scmp.eq.s32.totalorder %s23, 0
      %p134 = por %p132, %p133
      %p135 = scmp.le.s32.totalorder 1, %s17
      %p136 = scmp.lt.s32.totalorder %s17, 3
      %p137 = pnand %p135, %p136
      %p138 = pneg %p137
      // Predicated region
      $region9: #{tpu_custom_call.1} parent=5 // pred_check
        _
      $region10: #{tpu_custom_call.1} parent=5 // pred_check_branch
        %140 = sbr.rel (%p137) target = $region12
      $region11: #{tpu_custom_call.1} parent=5 // pred_region
        %s141 = ssub.s32 %s17, 1
        // Predicated region
        $region13: #{tpu_custom_call.1} parent=11 // pred_check
          %p142 = pneg %p50
        $region14: #{tpu_custom_call.1} parent=11 // pred_check_branch
          %144 = sbr.rel (%p142) target = $region16
        $region15: #{tpu_custom_call.1} parent=11 // pred_region
          _
        $region16: #{tpu_custom_call.1} parent=11 // pred_fallthru
          _
        // Predicated region
        $region17: #{tpu_custom_call.1} parent=11 // pred_check
          %p145 = pneg %p71
        $region18: #{tpu_custom_call.1} parent=11 // pred_check_branch
          %147 = sbr.rel (%p145) target = $region20
        $region19: #{tpu_custom_call.1} parent=11 // pred_region
          _
        $region20: #{tpu_custom_call.1} parent=11 // pred_fallthru
          _
      $region12: #{tpu_custom_call.1} parent=5 // pred_fallthru
        _
      %p148 = scmp.lt.s32.totalorder %s17, 2
      // Predicated region
      $region21: #{tpu_custom_call.1} parent=5 // pred_check
        %p149 = pneg %p148
      $region22: #{tpu_custom_call.1} parent=5 // pred_check_branch
        %151 = sbr.rel (%p149) target = $region24
      $region23: #{tpu_custom_call.1} parent=5 // pred_region
        // Predicated region
        $region25: #{tpu_custom_call.1} parent=23 // pred_check
          %p152 = pneg %p93
        $region26: #{tpu_custom_call.1} parent=23 // pred_check_branch
          %154 = sbr.rel (%p152) target = $region28
        $region27: #{tpu_custom_call.1} parent=23 // pred_region
          %s155 = sand.u32 %s83, 1
          %s156 = scalar_lea.sflag [#allocation5], %s155
          %s157 = sand.u32 %s83, 1
          %s158 = smul.addr %s157, 4
          %s159 = scalar_lea.vmem [#allocation4], %s158
          %s161 = ssub.s32 64, 64
          %162 = vsyncadd %s156, %s161
          %s163 = sadd.s32 %s25, %s24
          %s164 = smul.addr %s163, 64
          %s165 = scalar_lea.hbm %s2, %s164
          %s167 = sshll.u32 %s159, 4
          %s168 = int_to_ptr.vmem [resolvable:$true] %s167
          %170 = dma.hbm_to_vmem [thread:$0]  %s165, 64, %s168, %s156
        $region28: #{tpu_custom_call.1} parent=23 // pred_fallthru
          _
      $region24: #{tpu_custom_call.1} parent=5 // pred_fallthru
        _
      %p171 = scmp.le.s32.totalorder 1, %s17
      %p172 = scmp.lt.s32.totalorder %s17, 3
      %p173 = pnand %p171, %p172
      %p174 = pneg %p173
      // Predicated region
      $region29: #{tpu_custom_call.1} parent=5 // pred_check
        _
      $region30: #{tpu_custom_call.1} parent=5 // pred_check_branch
        %176 = sbr.rel (%p173) target = $region32
      $region31: #{tpu_custom_call.1} parent=5 // pred_region
        %s177 = ssub.s32 %s17, 1
        %s178 = sand.u32 %s86, 1
        %s179 = scalar_lea.sflag [#allocation5], %s178
        %s180 = sand.u32 %s86, 1
        %s181 = smul.addr %s180, 4
        %s182 = scalar_lea.vmem [#allocation4], %s181
        // Predicated region
        $region33: #{tpu_custom_call.1} parent=31 // pred_check
          %p183 = pneg %p99
        $region34: #{tpu_custom_call.1} parent=31 // pred_check_branch
          %185 = sbr.rel (%p183) target = $region36
        $region35: #{tpu_custom_call.1} parent=31 // pred_region
          %186 = dma.done %s179, 64
        $region36: #{tpu_custom_call.1} parent=31 // pred_fallthru
          _
        %p187 = pneg %p50
        %p188 = pneg %p47
        %p189 = pneg %p71
        %p190 = pneg %p68
        %s191 = sand.u32 %s86, 1
        %s192 = scalar_lea.sflag [#allocation5], %s191
        %s193 = sand.u32 %s86, 1
        %s194 = smul.addr %s193, 4
        %s195 = scalar_lea.vmem [#allocation4], %s194
        %p196 = pneg %p99
        %p197 = pneg %p96
        %p198 = pneg %p127
        %p199 = pneg %p124
        %s200 = sand.u32 %s114, 1
        %s201 = scalar_lea.sflag [#allocation6], %s200
        %s202 = sand.u32 %s114, 1
        %s203 = smul.addr %s202, 4
        %s204 = scalar_lea.vmem [#allocation7], %s203
        %v205 = vld [vmem:[%s182] sm:$0xf]
        %vm206 = vcmask 125952
        %v207 = vsel %vm206, %v205, 0.0
        %v208 = vrot.slane %v207, 4
        %v209 = vadd.f32 %v207, %v208
        %v210 = vrot.slane %v209, 2
        %v211 = vadd.f32 %v209, %v210
        %v212 = vrot.slane %v211, 1
        %v213 = vadd.f32 %v211, %v212
        %v214 = vmul.f32 %v213, 0.25
        %v215 = vsub.f32 %v205, %v214
        %v216 = vmul.f32 %v215, %v215
        %v217 = vsel %vm206, %v216, 0.0
        %v218 = vrot.slane %v217, 4
        %v219 = vadd.f32 %v217, %v218
        %v220 = vrot.slane %v219, 2
        %v221 = vadd.f32 %v219, %v220
        %v222 = vrot.slane %v221, 1
        %v223 = vadd.f32 %v221, %v222
        %v224 = vmul.f32 %v223, 0.25
        %s225 = sld [smem:[#allocation3]]
        %v226 = vrsqrt.pop %v224
        %v227 = vstv %s225
        %v228 = vmul.f32 %v227, %v226
        %s229 = sld [smem:[#allocation2]]
        %v230 = vstv %s229
        %v231 = vadd.f32 %v215, %v230
        %v232 = vmul.f32 %v231, %v228
        %233 = vst.msk [vmem:[%s204] sm:$0xf] %vm206, %v232
        %s234 = sand.u32 %s114, 1
        %s235 = scalar_lea.sflag [#allocation6], %s234
        %s236 = sand.u32 %s114, 1
        %s237 = smul.addr %s236, 4
        %s238 = scalar_lea.vmem [#allocation7], %s237
        // Predicated region
        $region37: #{tpu_custom_call.1} parent=31 // pred_check
          %p239 = pneg %p124
        $region38: #{tpu_custom_call.1} parent=31 // pred_check_branch
          %241 = sbr.rel (%p239) target = $region40
        $region39: #{tpu_custom_call.1} parent=31 // pred_region
          %s243 = ssub.s32 64, 64
          %244 = vsyncadd %s235, %s243
          %s245 = sadd.s32 %s27, %s26
          %s246 = smul.addr %s245, 64
          %s247 = scalar_lea.hbm %s3, %s246
          %s249 = sshll.u32 %s238, 4
          %s250 = int_to_ptr.vmem [resolvable:$true] %s249
          %252 = dma.vmem_to_hbm [thread:$0]  %s250, 64, %s247, %s235
        $region40: #{tpu_custom_call.1} parent=31 // pred_fallthru
          _
      $region32: #{tpu_custom_call.1} parent=5 // pred_fallthru
        _
      %p253 = scmp.le.s32.totalorder 2, %s17
      // Predicated region
      $region41: #{tpu_custom_call.1} parent=5 // pred_check
        %p254 = pneg %p253
      $region42: #{tpu_custom_call.1} parent=5 // pred_check_branch
        %256 = sbr.rel (%p254) target = $region44
      $region43: #{tpu_custom_call.1} parent=5 // pred_region
        %s257 = ssub.s32 %s17, 2
        // Predicated region
        $region45: #{tpu_custom_call.1} parent=43 // pred_check
          %p258 = pneg %p130
        $region46: #{tpu_custom_call.1} parent=43 // pred_check_branch
          %260 = sbr.rel (%p258) target = $region48
        $region47: #{tpu_custom_call.1} parent=43 // pred_region
          %s261 = sand.u32 %s115, 1
          %s262 = scalar_lea.sflag [#allocation6], %s261
          %s263 = sand.u32 %s115, 1
          %s264 = smul.addr %s263, 4
          %s265 = scalar_lea.vmem [#allocation7], %s264
          %266 = dma.done %s262, 64
        $region48: #{tpu_custom_call.1} parent=43 // pred_fallthru
          _
      $region44: #{tpu_custom_call.1} parent=5 // pred_fallthru
        _
    $region6: #{tpu_custom_call.1} parent=1 // loop_footer
      %s21 = sadd.s32 1, %s17
    $region7: #{tpu_custom_call.1} parent=1 // loop_footer_branch
      %16 = sbr.rel target = $region3
    $region8: #{tpu_custom_call.1} parent=1 // loop_exit
      _
    %267 = vsyncpa [#allocation5], 1
    %s268 = scalar_lea.sflag [#allocation5], 1
    %269 = vsyncpa %s268, 1
    %270 = vsyncpa [#allocation6], 1
    %s271 = scalar_lea.sflag [#allocation6], 1
    %272 = vsyncpa %s271, 1

</llo_original>
